<compile_context>
chip_gen: v7x
topology: tpu7x:2x2x1
jax: 0.10.0
libtpu: 0.0.40
codegen_flags: <defaults>
</compile_context>

<pallas_src>
import functools

import jax
import jax.numpy as jnp
from jax.experimental import pallas as pl
from jax.experimental.pallas import tpu as pltpu


_VMEM_LIMIT_BYTES = 48 * 1024 * 1024   # scoped VMEM limit: fits v7x (64 MiB/TC),
                                       # raised well above default on v5e/v6e.
_DATA_BUDGET_BYTES = 36 * 1024 * 1024  # target tile + temp footprint (headroom
                                       # below the scoped limit).
_MAX_AVG_LANE_CHUNKS = 256             # cap on statically-unrolled 128-lane
                                       # chunks per avg tile (compile time).


def _choose_avg_tile(hw, cin, in_bytes, override=None):
    """HW tile for the pooled (streaming-sum) path; always a multiple of 128."""
    assert hw >= 128
    if override is not None:
        t = int(override)
    else:
        # Footprint: 2 double-buffered (Cin, T) input tiles dominate; per-chunk
        # f32 casts are vreg-sized and the (Cin, 128) accumulator is tiny.
        t = _DATA_BUDGET_BYTES // (2 * max(cin, 1) * max(int(in_bytes), 1))
        t = min(t, _MAX_AVG_LANE_CHUNKS * 128)
    t = min(t, hw)
    return max(128, (t // 128) * 128)


def _choose_conv_tile(hw, cin, cout, in_bytes, out_bytes, override=None):
    """HW tile for the full-conv path, budgeted for v7x's 64 MiB VMEM."""
    assert hw >= 128
    if override is not None:
        t = min(int(override), hw)
    else:
        # 2x input tile + 2x output tile + f32 matmul temp + 2x fused weight/bias.
        fixed = 2 * cout * cin * 4 + 2 * cout * 4
        per_lane = 2 * cin * int(in_bytes) + 2 * cout * int(out_bytes) + 4 * cout
        t = max(128, (_DATA_BUDGET_BYTES - fixed) // max(per_lane, 1))
        t = min(t, hw)
    if t < hw:
        t = max(128, (t // 128) * 128)
    return t


def _uvc_head_avg_sum_kernel(x_ref, out_ref, acc_ref, *, hw, tile, n_hw_inner,
                             always_full):
    """Streaming spatial sum of x (pooling commuted with the linear conv).

    x_ref:   (1, Cin, tile)  channels-first spatial tile of one batch element
    out_ref: (1, 1, Cin, 1)  partial spatial sum for this (batch, split) cell
    acc_ref: (Cin, 128)      lane-resident f32 accumulator (VALU adds only;
                             one XLU cross-lane reduce on the last tile)
    """
    s = pl.program_id(1)
    t = pl.program_id(2)
    cin = acc_ref.shape[0]
    n_chunks = tile // 128

    @pl.when(t == 0)
    def _():
        acc_ref[...] = jnp.zeros_like(acc_ref)

    # Logical element offset of this tile along HW (unclamped; the index_map
    # clamps the DMA block index, the mask below uses the logical position).
    base = (s * n_hw_inner + t) * tile

    def _fold_full():
        # Per-chunk load + f32 cast + VALU add; no full-tile f32 temp.
        p = x_ref[0, :, 0:128].astype(jnp.float32)
        for c in range(1, n_chunks):
            p = p + x_ref[0, :, c * 128:(c + 1) * 128].astype(jnp.float32)
        acc_ref[...] += p

    def _fold_masked():
        # Only runs on tiles that overhang HW (ragged tail / clamped blocks).
        lane = jax.lax.broadcasted_iota(jnp.int32, (cin, 128), 1) + base
        p = jnp.zeros((cin, 128), jnp.float32)
        for c in range(n_chunks):
            chunk = x_ref[0, :, c * 128:(c + 1) * 128].astype(jnp.float32)
            p = p + jnp.where(lane + c * 128 < hw, chunk, 0.0)
        acc_ref[...] += p

    if always_full:
        _fold_full()
    else:
        full_tile = (base + tile) <= hw

        @pl.when(full_tile)
        def _():
            _fold_full()

        @pl.when(jnp.logical_not(full_tile))
        def _():
            _fold_masked()

    @pl.when(t == n_hw_inner - 1)
    def _():
        # Single cross-lane (XLU) reduce per (batch, split) cell.
        out_ref[0, 0] = jnp.sum(acc_ref[...], axis=1,
                                keepdims=True).astype(out_ref.dtype)


def _uvc_head_conv_kernel(x_ref, w_ref, b_ref, out_ref):
    """spatial_type=None path: fused 1x1 conv, lane-dense (Cout, T) output.

    Ragged last tile: the garbage lanes of the input only affect the same
    output lanes (no cross-column mixing in a 1x1 conv), and Pallas clips the
    out-of-range portion of the last output block on writeback.
    """
    y = jnp.dot(w_ref[...], x_ref[0], preferred_element_type=jnp.float32)
    out_ref[0] = (y + b_ref[...]).astype(out_ref.dtype)


def uvc_head_forward(x_nchw, w1, b1, w2, b2, *, spatial_type="avg",
                     hw_tile=None):
    """UVCHead.forward for num_convs=2, kernel_size=1, norm_cfg=None, act_cfg=None.

    x_nchw: (N, Cin, H, W) float32 or bfloat16
    w1: (Cmid, Cin) squeezed 1x1-conv weight, b1: (Cmid,)
    w2: (Cout, Cmid), b2: (Cout,)
    Returns (N, Cout, 1, 1) if spatial_type == 'avg', else (N, Cout, H, W).

    The algebraic conv fusion (and, for 'avg', commuting the pooling with the
    conv) is only valid because both ConvModules are purely linear.
    """
    N, Cin, H, W = x_nchw.shape
    HW = H * W
    Cout = w2.shape[0]
    in_bytes = x_nchw.dtype.itemsize
    out_dtype = x_nchw.dtype
    out_bytes = jnp.dtype(out_dtype).itemsize

    # y = W2 (W1 x + b1) + b2 = (W2 W1) x + (W2 b1 + b2)
    w_fused = jnp.dot(w2.astype(jnp.float32), w1.astype(jnp.float32))   # (Cout, Cin)
    b_fused = (jnp.dot(w2.astype(jnp.float32), b1.astype(jnp.float32))
               + b2.astype(jnp.float32))                                 # (Cout,)

    # Channels-first "token" layout straight from NCHW: a free reshape.
    x_cf = x_nchw.reshape(N, Cin, HW)

    # Small-problem fallback: lane-sparse (< 128) spatial extents are dominated
    # by pallas_call launch / per-step overhead; let XLA fuse the tiny op.
    if HW < 128:
        y = (jnp.einsum("oc,ncs->nos", w_fused, x_cf.astype(jnp.float32))
             + b_fused[None, :, None])
        if spatial_type == "avg":
            return jnp.mean(y, axis=2, keepdims=True).astype(
                out_dtype).reshape(N, Cout, 1, 1)
        return y.astype(out_dtype).reshape(N, Cout, H, W)

    if spatial_type == "avg":
        tile = _choose_avg_tile(HW, Cin, in_bytes, override=hw_tile)
        n_hw_total = pl.cdiv(HW, tile)
        # 2-way HW split (second parallel axis) so both TensorCores of a
        # dual-TC chip (v7x) are busy at batch size 1; partials are combined
        # in the wrapper (legal: the conv/pool pipeline is linear).
        n_split = 2 if (N == 1 and n_hw_total >= 4) else 1
        n_hw_inner = pl.cdiv(n_hw_total, n_split)
        always_full = (HW % tile == 0) and (n_split * n_hw_inner == n_hw_total)

        if n_split == 1:
            x_index_map = lambda n, s, t: (n, 0, t)
        else:
            def x_index_map(n, s, t):
                blk = s * n_hw_inner + t
                # Clamp so the DMA never reads a fully out-of-range block; the
                # kernel masks using the unclamped logical position, so any
                # re-read data is zeroed before accumulation.
                return (n, 0, jnp.minimum(blk, n_hw_total - 1))

        kernel = functools.partial(
            _uvc_head_avg_sum_kernel, hw=HW, tile=tile,
            n_hw_inner=n_hw_inner, always_full=always_full)

        partial_sums = pl.pallas_call(
            kernel,
            out_shape=jax.ShapeDtypeStruct((N, n_split, Cin, 1), jnp.float32),
            grid_spec=pltpu.PrefetchScalarGridSpec(
                num_scalar_prefetch=0,
                grid=(N, n_split, n_hw_inner),
                in_specs=[pl.BlockSpec((1, Cin, tile), x_index_map)],
                out_specs=pl.BlockSpec((1, 1, Cin, 1),
                                       lambda n, s, t: (n, s, 0, 0)),
                scratch_shapes=[pltpu.VMEM((Cin, 128), jnp.float32)],
            ),
            compiler_params=pltpu.CompilerParams(
                dimension_semantics=("parallel", "parallel", "arbitrary"),
                vmem_limit_bytes=_VMEM_LIMIT_BYTES),
            cost_estimate=pl.CostEstimate(
                flops=int(N * HW * Cin),
                transcendentals=0,
                bytes_accessed=int(N * HW * Cin * in_bytes
                                   + N * n_split * Cin * 4)),
        )(x_cf)

        # Tiny epilogue: apply the fused conv to the spatial mean once.
        xsum = jnp.sum(partial_sums, axis=(1, 3))                 # (N, Cin)
        pooled = (xsum * (1.0 / float(HW))) @ w_fused.T + b_fused  # (N, Cout)
        return pooled.astype(out_dtype).reshape(N, Cout, 1, 1)

    # spatial_type is None -> fused 1x1 conv output in NCHW (lane-dense
    # (Cout, T) tiles written directly into the (N, Cout, HW) result).
    tile = _choose_conv_tile(HW, Cin, Cout, in_bytes, out_bytes,
                             override=hw_tile)
    n_hw = pl.cdiv(HW, tile)
    y = pl.pallas_call(
        _uvc_head_conv_kernel,
        out_shape=jax.ShapeDtypeStruct((N, Cout, HW), out_dtype),
        grid_spec=pltpu.PrefetchScalarGridSpec(
            num_scalar_prefetch=0,
            grid=(N, n_hw),
            in_specs=[pl.BlockSpec((1, Cin, tile), lambda n, t: (n, 0, t)),
                      pl.BlockSpec((Cout, Cin), lambda n, t: (0, 0)),
                      pl.BlockSpec((Cout, 1), lambda n, t: (0, 0))],
            out_specs=pl.BlockSpec((1, Cout, tile), lambda n, t: (n, 0, t)),
        ),
        compiler_params=pltpu.CompilerParams(
            dimension_semantics=("parallel", "parallel"),
            vmem_limit_bytes=_VMEM_LIMIT_BYTES),
        cost_estimate=pl.CostEstimate(
            flops=int(2 * N * HW * Cin * Cout),
            transcendentals=0,
            bytes_accessed=int(N * HW * (Cin * in_bytes + Cout * out_bytes))),
    )(x_cf, w_fused, b_fused.reshape(Cout, 1))
    return y.reshape(N, Cout, H, W)


def _reference(x, w1, b1, w2, b2):
    """Pure-JAX reference: two un-fused 1x1 convs (validates the fusion)."""
    h = jnp.einsum("nchw,oc->nohw", x, w1) + b1[None, :, None, None]
    y = jnp.einsum("nchw,oc->nohw", h, w2) + b2[None, :, None, None]
    return y


if __name__ == "__main__":
    # Small deterministic example: batch=2, in_channels=4, channels=8, 16x16.
    N, Cin, H, W = 2, 4, 16, 16
    Cmid = Cout = 8  # self.channels
    init_std = 0.01

    key = jax.random.PRNGKey(0)
    kx, kw1, kb1, kw2, kb2, kx2 = jax.random.split(key, 6)
    x = jax.random.normal(kx, (N, Cin, H, W), dtype=jnp.float32)
    # Deterministic synthetic parameters (1x1 conv kernels squeezed to 2D).
    w1 = init_std * jax.random.normal(kw1, (Cmid, Cin), dtype=jnp.float32)
    b1 = init_std * jax.random.normal(kb1, (Cmid,), dtype=jnp.float32)
    w2 = init_std * jax.random.normal(kw2, (Cout, Cmid), dtype=jnp.float32)
    b2 = init_std * jax.random.normal(kb2, (Cout,), dtype=jnp.float32)

    y_ref = _reference(x, w1, b1, w2, b2)
    ref_avg = jnp.mean(y_ref, axis=(2, 3), keepdims=True)

    # --- spatial_type='avg' path (streaming-sum kernel, conv in epilogue) ---
    out = jax.block_until_ready(
        uvc_head_forward(x, w1, b1, w2, b2, spatial_type="avg"))
    assert out.shape == (N, Cout, 1, 1), out.shape
    assert jnp.allclose(out, ref_avg, atol=1e-5, rtol=1e-5)

    # --- spatial_type=None path (fused conv output, NCHW, lane-dense) ---
    out_full = jax.block_until_ready(
        uvc_head_forward(x, w1, b1, w2, b2, spatial_type=None))
    assert out_full.shape == (N, Cout, H, W)
    assert jnp.allclose(out_full, y_ref, atol=1e-5, rtol=1e-5)

    # --- HW-tiled path with a ragged, masked last tile (HW=576, T=128) ---
    H2 = W2_ = 24
    x2 = jax.random.normal(kx2, (N, Cin, H2, W2_), dtype=jnp.float32)
    y_ref2 = _reference(x2, w1, b1, w2, b2)
    ref2 = jnp.mean(y_ref2, axis=(2, 3), keepdims=True)

    out2 = jax.block_until_ready(
        uvc_head_forward(x2, w1, b1, w2, b2, spatial_type="avg", hw_tile=128))
    assert out2.shape == (N, Cout, 1, 1)
    assert jnp.allclose(out2, ref2, atol=1e-5, rtol=1e-5)

    out_full2 = jax.block_until_ready(
        uvc_head_forward(x2, w1, b1, w2, b2, spatial_type=None, hw_tile=128))
    assert out_full2.shape == (N, Cout, H2, W2_)
    assert jnp.allclose(out_full2, y_ref2, atol=1e-5, rtol=1e-5)

    # --- batch=1: exercises the 2-way HW split (second parallel axis used to
    # occupy both TensorCores on dual-TC chips) incl. clamped/masked blocks ---
    x3 = x2[:1]
    out3 = jax.block_until_ready(
        uvc_head_forward(x3, w1, b1, w2, b2, spatial_type="avg", hw_tile=128))
    ref3 = jnp.mean(_reference(x3, w1, b1, w2, b2), axis=(2, 3), keepdims=True)
    assert out3.shape == (1, Cout, 1, 1)
    assert jnp.allclose(out3, ref3, atol=1e-5, rtol=1e-5)

    # --- bf16 streaming input with f32 accumulation (avg path) ---
    x_bf = x2.astype(jnp.bfloat16)
    out_bf = jax.block_until_ready(
        uvc_head_forward(x_bf, w1, b1, w2, b2, spatial_type="avg"))
    ref_bf = jnp.mean(_reference(x_bf.astype(jnp.float32), w1, b1, w2, b2),
                      axis=(2, 3), keepdims=True)
    assert out_bf.dtype == jnp.bfloat16
    assert jnp.allclose(out_bf.astype(jnp.float32), ref_bf, atol=1e-3)

    print("KERNEL_OK")
</pallas_src>

<mosaic_0001>
module attributes {stable_mosaic.version = 11 : i64} {
  func.func @_uvc_head_avg_sum_kernel(%arg0: i32, %arg1: i32, %arg2: i32, %arg3: memref<1x4x256xf32, #tpu.memory_space<vmem>>, %arg4: memref<1x1x4x1xf32, #tpu.memory_space<vmem>>, %arg5: memref<4x128xf32, #tpu.memory_space<vmem>>) attributes {dimension_semantics = [#tpu.dimension_semantics<parallel>, #tpu.dimension_semantics<parallel>, #tpu.dimension_semantics<arbitrary>], iteration_bounds = array<i64: 2, 1, 1>, scalar_prefetch = 0 : i64, scratch_operands = 1 : i64, tpu.core_type = #tpu.core_type<tc>, window_params = [{transform_indices = @transform_0, window_bounds = array<i64: 1, 4, 256>}, {transform_indices = @transform_1, window_bounds = array<i64: 1, 1, 4, 1>}]} {
    %c0_i32 = arith.constant 0 : i32
    %0 = arith.cmpi eq, %arg2, %c0_i32 : i32
    %1 = arith.extui %0 : i1 to i32
    %c0_i32_0 = arith.constant 0 : i32
    %2 = arith.cmpi ne, %1, %c0_i32_0 : i32
    scf.if %2 {
      %cst = arith.constant 0.000000e+00 : f32
      %14 = vector.broadcast %cst : f32 to vector<4x128xf32>
      %c0_11 = arith.constant 0 : index
      %c0_12 = arith.constant 0 : index
      %15 = vector.load %arg5[%c0_11, %c0_12] : memref<4x128xf32, #tpu.memory_space<vmem>>, vector<4x128xf32>
      tpu.vector_store %arg5[%c0_11, %c0_12], %14 {strides = array<i32>} : memref<4x128xf32, #tpu.memory_space<vmem>>, vector<4x128xf32>,
    } else {
    }
    %c0 = arith.constant 0 : index
    %c0_1 = arith.constant 0 : index
    %c0_2 = arith.constant 0 : index
    %3 = vector.load %arg3[%c0, %c0_1, %c0_2] : memref<1x4x256xf32, #tpu.memory_space<vmem>>, vector<1x4x128xf32>
    %4 = vector.shape_cast %3 : vector<1x4x128xf32> to vector<4x128xf32>
    %c0_3 = arith.constant 0 : index
    %c0_4 = arith.constant 0 : index
    %c128 = arith.constant 128 : index
    %5 = vector.load %arg3[%c0_3, %c0_4, %c128] : memref<1x4x256xf32, #tpu.memory_space<vmem>>, vector<1x4x128xf32>
    %6 = vector.shape_cast %5 : vector<1x4x128xf32> to vector<4x128xf32>
    %7 = arith.addf %4, %6 : vector<4x128xf32>
    %c0_5 = arith.constant 0 : index
    %c0_6 = arith.constant 0 : index
    %8 = vector.load %arg5[%c0_5, %c0_6] : memref<4x128xf32, #tpu.memory_space<vmem>>, vector<4x128xf32>
    %9 = arith.addf %8, %7 : vector<4x128xf32>
    %c0_7 = arith.constant 0 : index
    %c0_8 = arith.constant 0 : index
    %10 = vector.load %arg5[%c0_7, %c0_8] : memref<4x128xf32, #tpu.memory_space<vmem>>, vector<4x128xf32>
    tpu.vector_store %arg5[%c0_7, %c0_8], %9 {strides = array<i32>} : memref<4x128xf32, #tpu.memory_space<vmem>>, vector<4x128xf32>,
    %c0_i32_9 = arith.constant 0 : i32
    %11 = arith.cmpi eq, %arg2, %c0_i32_9 : i32
    %12 = arith.extui %11 : i1 to i32
    %c0_i32_10 = arith.constant 0 : i32
    %13 = arith.cmpi ne, %12, %c0_i32_10 : i32
    scf.if %13 {
      %c0_11 = arith.constant 0 : index
      %c0_12 = arith.constant 0 : index
      %14 = vector.load %arg5[%c0_11, %c0_12] : memref<4x128xf32, #tpu.memory_space<vmem>>, vector<4x128xf32>
      %cst = arith.constant dense<0.000000e+00> : vector<4xf32>
      %15 = vector.multi_reduction <add>, %14, %cst [1] : vector<4x128xf32> to vector<4xf32>
      %16 = vector.shape_cast %15 : vector<4xf32> to vector<4x1xf32>
      %c0_13 = arith.constant 0 : index
      %c0_14 = arith.constant 0 : index
      %c0_15 = arith.constant 0 : index
      %c0_16 = arith.constant 0 : index
      %17 = vector.load %arg4[%c0_13, %c0_14, %c0_15, %c0_16] : memref<1x1x4x1xf32, #tpu.memory_space<vmem>>, vector<1x1x4x1xf32>
      %18 = vector.shape_cast %17 : vector<1x1x4x1xf32> to vector<4x1xf32>
      %19 = vector.shape_cast %16 : vector<4x1xf32> to vector<1x1x4x1xf32>
      tpu.vector_store %arg4[%c0_13, %c0_14, %c0_15, %c0_16], %19 {strides = array<i32>} : memref<1x1x4x1xf32, #tpu.memory_space<vmem>>, vector<1x1x4x1xf32>,
    } else {
    }
    return
  }
  func.func @transform_0(%arg0: i32, %arg1: i32, %arg2: i32) -> (i32, i32, i32) {
    %c0_i32 = arith.constant 0 : i32
    %c0_i32_0 = arith.constant 0 : i32
    return %arg0, %c0_i32, %arg2 : i32, i32, i32
  }
  func.func @transform_1(%arg0: i32, %arg1: i32, %arg2: i32) -> (i32, i32, i32, i32) {
    %c0_i32 = arith.constant 0 : i32
    %c0_i32_0 = arith.constant 0 : i32
    %c0_i32_1 = arith.constant 0 : i32
    return %arg0, %arg1, %c0_i32, %c0_i32_0 : i32, i32, i32, i32
  }
}

</mosaic_0001>

<llo_original>
// kernel: tpu_custom_call.1
$region0: #{tpu_custom_call.1}
  #allocation0 [shape = 'u32[]', space=smem, size = 0x4, offset = 0x4, fixed_abs, tag = 'smem constant byte address 0x4 - core index']
  #allocation1 [shape = 'u32[144,128]{1,0:T(1,128)}', space=vmem, size = 0x12000, scoped, tag = 'internal scratch']
  #allocation2 [shape = 'f32[4,128]{1,0:T(4,128)}', space=vmem, size = 0x800, scoped, tag = 'scratch operand']
  %s0 = inlined_call_operand.hbm [shape: f32[2,4,256], index: 0, kind: input, shape index: {}]
  %s1 = inlined_call_operand.vmem [shape: f32[2,1,4,1], index: 1, kind: output, shape index: {}]
  %s2 = sld [smem:[#allocation0]]
  $region49: #{tpu_custom_call.1} parent=0
    _
  %s4 = ssub.s32 1, %s2
  %s5 = scalar_select 0, %s4, %s2
  $region1: #{tpu_custom_call.1} parent=0
    #allocation3 [shape = 'u8[8192]{0}', space=vmem, size = 0x2000, scoped, tag = 'input window, operand 0']
    #allocation4 [shape = 's32[2]{0}', space=sflag, size = 0x8, scoped, tag = 'scoped memory for tpu_custom_call.1']
    %6 = vsyncpa [#allocation4], 0
    %s7 = scalar_lea.sflag [#allocation4], 1
    %8 = vsyncpa %s7, 0
    loop: start=0, step=1, limit=4
    $region2: #{tpu_custom_call.1} parent=1 // loop_pre_header
      _
    $region3: #{tpu_custom_call.1} parent=1 // loop_header
      %s10 = sphi 0, %s14
      %p11 = scmp.ge.s32.totalorder %s10, 4
      %s17 = sphi 0, %s36
      %s18 = sphi 0, %s32
      %s19 = sphi 0, %s28
      %s20 = sphi 0, %s17
      %s21 = sphi 0, %s18
      %s22 = sphi 0, %s19
      %s23 = sphi 0, %s20
      %s24 = sphi 0, %s21
      %s25 = sphi 0, %s22
      %s41 = sphi 0, %s43
      %s44 = sphi 0, %s41
      %s45 = sphi 0, %s44
      %s61 = sphi 0, %s45
      %s69 = sphi 0, %s71
      %s72 = sphi 0, %s69
      %s73 = sphi 0, %s72
      %s89 = sphi 0, %s73
    $region4: #{tpu_custom_call.1} parent=1 // loop_header_branch
      %13 = sbr.rel (%p11) target = $region8
    $region5: #{tpu_custom_call.1} parent=1 // loop_body
      %s15 = ssub.s32 %s10, 1
      %s16 = ssub.s32 %s10, 2
      %s26 = sadd.s32 1, %s19
      %p27 = scmp.ge.s32.totalorder %s26, 1
      %s28 = scalar_select %p27, 0, %s26
      %s29 = sadd.s32 1, %s18
      %s30 = scalar_select %p27, %s29, %s18
      %p31 = scmp.ge.s32.totalorder %s30, 1
      %s32 = scalar_select %p31, 0, %s30
      %s33 = sadd.s32 1, %s17
      %s34 = scalar_select %p31, %s33, %s17
      %p35 = scmp.ge.s32.totalorder %s34, 2
      %s36 = scalar_select %p35, 0, %s34
      %s37 = ssub.s32 %s17, %s36
      %s38 = ssub.s32 %s19, %s28
      %s39 = sor.u32 %s37, %s38
      %p40 = scmp.eq.s32.totalorder %s39, 0
      %s42 = sadd.s32 %s41, 1
      %s43 = scalar_select %p40, %s41, %s42
      %p46 = pneg %p40
      %p47 = scmp.eq.s32.totalorder %s10, 1
      %p48 = por %p46, %p47
      %p49 = scmp.ne.s32.totalorder %s41, %s44
      %p50 = scmp.eq.s32.totalorder %s10, 0
      %p51 = por %p49, %p50
      %p52 = scmp.ne.s32.totalorder %s41, %s44
      %p53 = scmp.eq.s32.totalorder %s15, 1
      %p54 = por %p52, %p53
      %p55 = scmp.ne.s32.totalorder %s44, %s45
      %p56 = scmp.eq.s32.totalorder %s15, 0
      %p57 = por %p55, %p56
      %p58 = scmp.ne.s32.totalorder %s44, %s45
      %p59 = scmp.eq.s32.totalorder %s16, 1
      %p60 = por %p58, %p59
      %p62 = scmp.ne.s32.totalorder %s45, %s61
      %p63 = scmp.eq.s32.totalorder %s16, 0
      %p64 = por %p62, %p63
      %s65 = ssub.s32 %s17, %s36
      %s66 = ssub.s32 %s18, %s32
      %s67 = sor.u32 %s65, %s66
      %p68 = scmp.eq.s32.totalorder %s67, 0
      %s70 = sadd.s32 %s69, 1
      %s71 = scalar_select %p68, %s69, %s70
      %p74 = pneg %p68
      %p75 = scmp.eq.s32.totalorder %s10, 1
      %p76 = por %p74, %p75
      %p77 = scmp.ne.s32.totalorder %s69, %s72
      %p78 = scmp.eq.s32.totalorder %s10, 0
      %p79 = por %p77, %p78
      %p80 = scmp.ne.s32.totalorder %s69, %s72
      %p81 = scmp.eq.s32.totalorder %s15, 1
      %p82 = por %p80, %p81
      %p83 = scmp.ne.s32.totalorder %s72, %s73
      %p84 = scmp.eq.s32.totalorder %s15, 0
      %p85 = por %p83, %p84
      %p86 = scmp.ne.s32.totalorder %s72, %s73
      %p87 = scmp.eq.s32.totalorder %s16, 1
      %p88 = por %p86, %p87
      %p90 = scmp.ne.s32.totalorder %s73, %s89
      %p91 = scmp.eq.s32.totalorder %s16, 0
      %p92 = por %p90, %p91
      %p93 = scmp.le.s32.totalorder 1, %s10
      %p94 = scmp.lt.s32.totalorder %s10, 3
      %p95 = pnand %p93, %p94
      %p96 = pneg %p95
      // Predicated region
      $region9: #{tpu_custom_call.1} parent=5 // pred_check
        _
      $region10: #{tpu_custom_call.1} parent=5 // pred_check_branch
        %98 = sbr.rel (%p95) target = $region12
      $region11: #{tpu_custom_call.1} parent=5 // pred_region
        %s99 = ssub.s32 %s10, 1
      $region12: #{tpu_custom_call.1} parent=5 // pred_fallthru
        _
      %p100 = scmp.lt.s32.totalorder %s10, 2
      // Predicated region
      $region13: #{tpu_custom_call.1} parent=5 // pred_check
        %p101 = pneg %p100
      $region14: #{tpu_custom_call.1} parent=5 // pred_check_branch
        %103 = sbr.rel (%p101) target = $region16
      $region15: #{tpu_custom_call.1} parent=5 // pred_region
        // Predicated region
        $region17: #{tpu_custom_call.1} parent=15 // pred_check
          %p104 = pneg %p51
        $region18: #{tpu_custom_call.1} parent=15 // pred_check_branch
          %106 = sbr.rel (%p104) target = $region20
        $region19: #{tpu_custom_call.1} parent=15 // pred_region
          %s107 = sand.u32 %s41, 1
          %s108 = scalar_lea.sflag [#allocation4], %s107
          %s109 = sand.u32 %s41, 1
          %s110 = smul.addr %s109, 8
          %s111 = scalar_lea.vmem [#allocation3], %s110
          %s112 = smul.u32 2, %s19
          %s114 = ssub.s32 128, 128
          %115 = vsyncadd %s108, %s114
          %s116 = smul.addr %s17, 2
          %s117 = sadd.s32 %s112, %s116
          %s118 = smul.addr %s117, 64
          %s119 = scalar_lea.hbm %s0, %s118
          %s121 = sshll.u32 %s111, 4
          %s122 = int_to_ptr.vmem [resolvable:$true] %s121
          %124 = dma.hbm_to_vmem [thread:$0]  %s119, 128, %s122, %s108
        $region20: #{tpu_custom_call.1} parent=15 // pred_fallthru
          _
      $region16: #{tpu_custom_call.1} parent=5 // pred_fallthru
        _
      %p125 = scmp.le.s32.totalorder 1, %s10
      %p126 = scmp.lt.s32.totalorder %s10, 3
      %p127 = pnand %p125, %p126
      %p128 = pneg %p127
      // Predicated region
      $region21: #{tpu_custom_call.1} parent=5 // pred_check
        _
      $region22: #{tpu_custom_call.1} parent=5 // pred_check_branch
        %130 = sbr.rel (%p127) target = $region24
      $region23: #{tpu_custom_call.1} parent=5 // pred_region
        %s131 = ssub.s32 %s10, 1
        %s132 = sand.u32 %s44, 1
        %s133 = scalar_lea.sflag [#allocation4], %s132
        %s134 = sand.u32 %s44, 1
        %s135 = smul.addr %s134, 8
        %s136 = scalar_lea.vmem [#allocation3], %s135
        // Predicated region
        $region25: #{tpu_custom_call.1} parent=23 // pred_check
          %p137 = pneg %p57
        $region26: #{tpu_custom_call.1} parent=23 // pred_check_branch
          %139 = sbr.rel (%p137) target = $region28
        $region27: #{tpu_custom_call.1} parent=23 // pred_region
          %140 = dma.done %s133, 128
        $region28: #{tpu_custom_call.1} parent=23 // pred_fallthru
          _
        %s141 = sand.u32 %s44, 1
        %s142 = scalar_lea.sflag [#allocation4], %s141
        %s143 = sand.u32 %s44, 1
        %s144 = smul.addr %s143, 8
        %s145 = scalar_lea.vmem [#allocation3], %s144
        %p146 = pneg %p57
        %p147 = pneg %p54
        %p148 = pneg %p85
        %p149 = pneg %p82
        %p150 = scmp.lt.s32.totalorder %s20, 1
        %s151 = scalar_select %p150, %s20, 1
        %p152 = scmp.lt.s32.totalorder %s21, 0
        %s153 = scalar_select %p152, %s21, 0
        %s154 = sadd.s32 %s153, %s151
        %s155 = smul.addr %s154, 4
        %s156 = scalar_lea.vmem %s1, %s155
        %s157 = smul.u32 2, %s22
        %p158 = scmp.lt.s32.totalorder %s20, 1
        %s159 = scalar_select %p158, %s20, 1
        %p160 = scmp.lt.s32.totalorder %s21, 0
        %s161 = scalar_select %p160, %s21, 0
        %s162 = sadd.s32 %s161, %s159
        %s163 = smul.addr %s162, 4
        %s164 = scalar_lea.vmem %s1, %s163
        %p165 = scmp.eq.s32.totalorder %s22, 0
        // Predicated region
        $region29: #{tpu_custom_call.1} parent=23 // pred_check
          %p166 = pneg %p165
        $region30: #{tpu_custom_call.1} parent=23 // pred_check_branch
          %168 = sbr.rel (%p166) target = $region32
        $region31: #{tpu_custom_call.1} parent=23 // pred_region
          %169 = vst [vmem:[#allocation2] sm:$0xf] 0.0
        $region32: #{tpu_custom_call.1} parent=23 // pred_fallthru
          _
        %v170 = vld [vmem:[%s136] sm:$0xf]
        %v171 = vld [vmem:[%s136 + $0x4] sm:$0xf]
        %v172 = vadd.f32 %v170, %v171
        %v173 = vld [vmem:[#allocation2] sm:$0xf]
        %v174 = vadd.f32 %v173, %v172
        %175 = vst [vmem:[#allocation2] sm:$0xf] %v174
        // Predicated region
        $region33: #{tpu_custom_call.1} parent=23 // pred_check
          %p176 = pneg %p165
        $region34: #{tpu_custom_call.1} parent=23 // pred_check_branch
          %178 = sbr.rel (%p176) target = $region36
        $region35: #{tpu_custom_call.1} parent=23 // pred_region
          %v179 = vld [vmem:[#allocation2] sm:$0xf]
          %vm180 = vcmask 1043456
          %v181 = vsel %vm180, %v179, 0.0
          %182 = vadd.xlane.f32.xlu0 %v181
          %v183 = vpop.xlane.xlu0 %182
          %vm184 = vcmask 3072
          %185 = vst.msk [vmem:[%s164] sm:$0xf] %vm184, %v183
        $region36: #{tpu_custom_call.1} parent=23 // pred_fallthru
          _
        %p186 = scmp.lt.s32.totalorder %s20, 1
        %s187 = scalar_select %p186, %s20, 1
        %p188 = scmp.lt.s32.totalorder %s21, 0
        %s189 = scalar_select %p188, %s21, 0
        %s190 = sadd.s32 %s189, %s187
        %s191 = smul.addr %s190, 4
        %s192 = scalar_lea.vmem %s1, %s191
        // Predicated region
        $region37: #{tpu_custom_call.1} parent=23 // pred_check
          %p193 = pneg %p82
        $region38: #{tpu_custom_call.1} parent=23 // pred_check_branch
          %195 = sbr.rel (%p193) target = $region40
        $region39: #{tpu_custom_call.1} parent=23 // pred_region
          _
        $region40: #{tpu_custom_call.1} parent=23 // pred_fallthru
          _
      $region24: #{tpu_custom_call.1} parent=5 // pred_fallthru
        _
      %p196 = scmp.le.s32.totalorder 2, %s10
      // Predicated region
      $region41: #{tpu_custom_call.1} parent=5 // pred_check
        %p197 = pneg %p196
      $region42: #{tpu_custom_call.1} parent=5 // pred_check_branch
        %199 = sbr.rel (%p197) target = $region44
      $region43: #{tpu_custom_call.1} parent=5 // pred_region
        %s200 = ssub.s32 %s10, 2
        // Predicated region
        $region45: #{tpu_custom_call.1} parent=43 // pred_check
          %p201 = pneg %p88
        $region46: #{tpu_custom_call.1} parent=43 // pred_check_branch
          %203 = sbr.rel (%p201) target = $region48
        $region47: #{tpu_custom_call.1} parent=43 // pred_region
          %p204 = scmp.lt.s32.totalorder %s23, 1
          %s205 = scalar_select %p204, %s23, 1
          %p206 = scmp.lt.s32.totalorder %s24, 0
          %s207 = scalar_select %p206, %s24, 0
          %s208 = sadd.s32 %s207, %s205
          %s209 = smul.addr %s208, 4
          %s210 = scalar_lea.vmem %s1, %s209
        $region48: #{tpu_custom_call.1} parent=43 // pred_fallthru
          _
      $region44: #{tpu_custom_call.1} parent=5 // pred_fallthru
        _
    $region6: #{tpu_custom_call.1} parent=1 // loop_footer
      %s14 = sadd.s32 1, %s10
    $region7: #{tpu_custom_call.1} parent=1 // loop_footer_branch
      %9 = sbr.rel target = $region3
    $region8: #{tpu_custom_call.1} parent=1 // loop_exit
      _
    %211 = vsyncpa [#allocation4], 1
    %s212 = scalar_lea.sflag [#allocation4], 1
    %213 = vsyncpa %s212, 1

</llo_original>
